<compile_context>
chip_gen: v6e
topology: v6e:2x2x1
jax: 0.10.0
libtpu: 0.0.40
codegen_flags: <defaults>
</compile_context>

<pallas_src>
import functools

import jax
import jax.numpy as jnp
from jax.experimental import pallas as pl
from jax.experimental.pallas import tpu as pltpu


def _conconv_kernel(x2_ref, x1_ref, w2_ref, w1_ref, b_ref, o_ref):
    # x2_ref: (NB, C2, t), x1_ref: (NB, C1, t)  -- spatial axis on lanes.
    # w2_ref: (P, C2), w1_ref: (P, C1), b_ref: (P, 1), o_ref: (NB, P, t).
    w2 = w2_ref[...]
    w1 = w1_ref[...]
    b = b_ref[...]
    nb = o_ref.shape[0]
    # NB is a small static constant; an unrolled loop keeps every step a plain
    # 2-D MXU dot with the spatial axis lane-dense (full-width stores).
    for i in range(nb):
        acc = jnp.dot(w2, x2_ref[i], preferred_element_type=jnp.float32)
        acc = acc + jnp.dot(w1, x1_ref[i], preferred_element_type=jnp.float32)
        o_ref[i] = (acc + b).astype(o_ref.dtype)


def _round_up(x, m):
    return ((x + m - 1) // m) * m


@functools.partial(jax.jit, static_argnames=("t_hw",))
def conconv_forward(x1, x2, weight, bias, *, t_hw=32768):
    """ConConv.forward(x1, x2) with nn.Conv2d(C1+C2, P, kernel_size=1, bias=True).

    x1: (N, C1, H, W), x2: (N, C2, H, W)  [NCHW, matching PyTorch]
    weight: (P, C2 + C1, 1, 1), bias: (P,)
    returns: (N, P, H, W)
    """
    N, C1, H, W = x1.shape
    _, C2, _, _ = x2.shape
    P = weight.shape[0]
    HW = H * W
    itemsize = jnp.dtype(x1.dtype).itemsize

    # NCHW -> (N, C, H*W): free reshapes (no data movement).
    x1_f = x1.reshape(N, C1, HW)
    x2_f = x2.reshape(N, C2, HW)

    # Split conv weight along the concatenated channel axis: cat([x2, x1]).
    w = weight.reshape(P, C2 + C1)   # (P, Ctot)
    w2 = w[:, :C2]                   # (P, C2) multiplies x2
    w1 = w[:, C2:]                   # (P, C1) multiplies x1
    b = bias.reshape(P, 1)

    # ---- Tile selection (bandwidth-bound: maximize payload per grid step) ---
    # Bytes moved per lane column per step = (C1 + C2 + P) * itemsize.
    bytes_per_lane = (C1 + C2 + P) * itemsize
    vmem_budget = 12 * 1024 * 1024            # safe under v5e's 16 MiB default
    max_lanes = max(128, ((vmem_budget // (2 * bytes_per_lane)) // 128) * 128)

    target_lanes = min(_round_up(t_hw, 128), max_lanes)
    t = min(target_lanes, _round_up(HW, 128))          # spatial tile (x128)
    nb = max(1, min(N, target_lanes // t))              # batch block for small HW

    # Keep at least 2 grid steps when possible (v7x has 2 TensorCores/chip).
    if pl.cdiv(N, nb) * pl.cdiv(HW, t) < 2:
        if nb > 1:
            nb = (nb + 1) // 2
        elif t > 128:
            t = max(128, _round_up(t // 2, 128))

    grid = (pl.cdiv(N, nb), pl.cdiv(HW, t))

    ctot = C1 + C2
    cost = pl.CostEstimate(
        flops=2 * N * HW * ctot * P,
        transcendentals=0,
        bytes_accessed=N * HW * (ctot + P) * itemsize
        + (ctot * P + P) * jnp.dtype(weight.dtype).itemsize,
    )

    out = pl.pallas_call(
        _conconv_kernel,
        out_shape=jax.ShapeDtypeStruct((N, P, HW), x1.dtype),
        grid_spec=pltpu.PrefetchScalarGridSpec(
            num_scalar_prefetch=0,
            grid=grid,
            in_specs=[
                # x tiles: NB batches, channels on sublanes, spatial on lanes.
                # Ragged tail blocks (batch and spatial) are handled by Pallas;
                # the per-column compute never mixes columns, so OOB garbage
                # only lands in columns whose writeback is masked off.
                pl.BlockSpec((nb, C2, t), lambda n, j: (n, 0, j)),
                pl.BlockSpec((nb, C1, t), lambda n, j: (n, 0, j)),
                # weights / bias: tiny, resident across the whole grid.
                pl.BlockSpec((P, C2), lambda n, j: (0, 0)),
                pl.BlockSpec((P, C1), lambda n, j: (0, 0)),
                pl.BlockSpec((P, 1), lambda n, j: (0, 0)),
            ],
            out_specs=pl.BlockSpec((nb, P, t), lambda n, j: (n, 0, j)),
        ),
        compiler_params=pltpu.CompilerParams(
            dimension_semantics=("parallel", "parallel")),
        cost_estimate=cost,
    )(x2_f, x1_f, w2, w1, b)

    return out.reshape(N, P, H, W)


def _reference(x1, x2, weight, bias):
    # Pure-JAX reference: concat + 1x1 conv (NCHW).
    x = jnp.concatenate([x2, x1], axis=1)
    out = jax.lax.conv_general_dilated(
        x, weight, window_strides=(1, 1), padding="VALID",
        dimension_numbers=("NCHW", "OIHW", "NCHW"))
    return out + bias.reshape(1, -1, 1, 1)


if __name__ == "__main__":
    key = jax.random.PRNGKey(0)
    k1, k2, kw, kb = jax.random.split(key, 4)

    N, C1, C2, H, W = 2, 4, 4, 16, 16   # inplanes_x1=4, inplanes_x2=4
    P = 8                               # planes

    x1 = jax.random.normal(k1, (N, C1, H, W), dtype=jnp.float32)
    x2 = jax.random.normal(k2, (N, C2, H, W), dtype=jnp.float32)

    # Deterministic synthetic parameters for nn.Conv2d(C1+C2, P, 1, bias=True).
    weight = jax.random.normal(kw, (P, C1 + C2, 1, 1), dtype=jnp.float32) * 0.1
    bias = jax.random.normal(kb, (P,), dtype=jnp.float32) * 0.1

    out = jax.block_until_ready(conconv_forward(x1, x2, weight, bias))
    ref = _reference(x1, x2, weight, bias)
    assert out.shape == (N, P, H, W), out.shape
    assert jnp.allclose(out, ref, atol=1e-5, rtol=1e-5), "mismatch vs reference"

    # Check 2: spatial size not a multiple of 128 (ragged spatial tail block).
    H2, W2 = 10, 10
    x1b = jax.random.normal(k1, (N, C1, H2, W2), dtype=jnp.float32)
    x2b = jax.random.normal(k2, (N, C2, H2, W2), dtype=jnp.float32)
    outb = jax.block_until_ready(conconv_forward(x1b, x2b, weight, bias))
    refb = _reference(x1b, x2b, weight, bias)
    assert outb.shape == (N, P, H2, W2), outb.shape
    assert jnp.allclose(outb, refb, atol=1e-5, rtol=1e-5), "mismatch (ragged HW)"

    # Check 3: odd batch with batch-blocking + ragged spatial tile.
    N3, H3, W3 = 3, 40, 40
    x1c = jax.random.normal(k1, (N3, C1, H3, W3), dtype=jnp.float32)
    x2c = jax.random.normal(k2, (N3, C2, H3, W3), dtype=jnp.float32)
    outc = jax.block_until_ready(conconv_forward(x1c, x2c, weight, bias))
    refc = _reference(x1c, x2c, weight, bias)
    assert outc.shape == (N3, P, H3, W3), outc.shape
    assert jnp.allclose(outc, refc, atol=1e-5, rtol=1e-5), "mismatch (batch block)"

    print("KERNEL_OK")
</pallas_src>

<mosaic_0001>
module attributes {stable_mosaic.version = 11 : i64} {
  func.func @_conconv_kernel(%arg0: i32, %arg1: i32, %arg2: memref<1x4x256xf32, #tpu.memory_space<vmem>>, %arg3: memref<1x4x256xf32, #tpu.memory_space<vmem>>, %arg4: memref<8x4xf32, #tpu.memory_space<vmem>>, %arg5: memref<8x4xf32, #tpu.memory_space<vmem>>, %arg6: memref<8x1xf32, #tpu.memory_space<vmem>>, %arg7: memref<1x8x256xf32, #tpu.memory_space<vmem>>) attributes {dimension_semantics = [#tpu.dimension_semantics<parallel>, #tpu.dimension_semantics<parallel>], iteration_bounds = array<i64: 2, 1>, scalar_prefetch = 0 : i64, scratch_operands = 0 : i64, tpu.core_type = #tpu.core_type<tc>, window_params = [{transform_indices = @transform_0, window_bounds = array<i64: 1, 4, 256>}, {transform_indices = @transform_1, window_bounds = array<i64: 1, 4, 256>}, {pipeline_mode = #tpu.pipeline_mode<synchronous>, transform_indices = @transform_2, window_bounds = array<i64: 8, 4>}, {pipeline_mode = #tpu.pipeline_mode<synchronous>, transform_indices = @transform_3, window_bounds = array<i64: 8, 4>}, {pipeline_mode = #tpu.pipeline_mode<synchronous>, transform_indices = @transform_4, window_bounds = array<i64: 8, 1>}, {transform_indices = @transform_5, window_bounds = array<i64: 1, 8, 256>}]} {
    %c0 = arith.constant 0 : index
    %c0_0 = arith.constant 0 : index
    %0 = vector.load %arg4[%c0, %c0_0] : memref<8x4xf32, #tpu.memory_space<vmem>>, vector<8x4xf32>
    %c0_1 = arith.constant 0 : index
    %c0_2 = arith.constant 0 : index
    %1 = vector.load %arg5[%c0_1, %c0_2] : memref<8x4xf32, #tpu.memory_space<vmem>>, vector<8x4xf32>
    %c0_3 = arith.constant 0 : index
    %c0_4 = arith.constant 0 : index
    %2 = vector.load %arg6[%c0_3, %c0_4] : memref<8x1xf32, #tpu.memory_space<vmem>>, vector<8x1xf32>
    %c0_5 = arith.constant 0 : index
    %c0_6 = arith.constant 0 : index
    %c0_7 = arith.constant 0 : index
    %3 = vector.load %arg2[%c0_5, %c0_6, %c0_7] : memref<1x4x256xf32, #tpu.memory_space<vmem>>, vector<1x4x256xf32>
    %4 = vector.shape_cast %3 : vector<1x4x256xf32> to vector<4x256xf32>
    %cst = arith.constant dense<0.000000e+00> : vector<8x256xf32>
    %5 = tpu.matmul %0, %4, %cst {dimension_numbers = #tpu.dot_dimension_numbers<[1], [0], [0], [1], [0, 0, 1, 1], [], []>} : vector<8x4xf32>, vector<4x256xf32>, vector<8x256xf32> -> vector<8x256xf32>
    %c0_8 = arith.constant 0 : index
    %c0_9 = arith.constant 0 : index
    %c0_10 = arith.constant 0 : index
    %6 = vector.load %arg3[%c0_8, %c0_9, %c0_10] : memref<1x4x256xf32, #tpu.memory_space<vmem>>, vector<1x4x256xf32>
    %7 = vector.shape_cast %6 : vector<1x4x256xf32> to vector<4x256xf32>
    %cst_11 = arith.constant dense<0.000000e+00> : vector<8x256xf32>
    %8 = tpu.matmul %1, %7, %cst_11 {dimension_numbers = #tpu.dot_dimension_numbers<[1], [0], [0], [1], [0, 0, 1, 1], [], []>} : vector<8x4xf32>, vector<4x256xf32>, vector<8x256xf32> -> vector<8x256xf32>
    %9 = arith.addf %5, %8 : vector<8x256xf32>
    %10 = vector.broadcast %2 : vector<8x1xf32> to vector<8x256xf32>
    %11 = arith.addf %9, %10 : vector<8x256xf32>
    %c0_12 = arith.constant 0 : index
    %c0_13 = arith.constant 0 : index
    %c0_14 = arith.constant 0 : index
    %12 = vector.load %arg7[%c0_12, %c0_13, %c0_14] : memref<1x8x256xf32, #tpu.memory_space<vmem>>, vector<1x8x256xf32>
    %13 = vector.shape_cast %12 : vector<1x8x256xf32> to vector<8x256xf32>
    %14 = vector.shape_cast %11 : vector<8x256xf32> to vector<1x8x256xf32>
    tpu.vector_store %arg7[%c0_12, %c0_13, %c0_14], %14 {strides = array<i32>} : memref<1x8x256xf32, #tpu.memory_space<vmem>>, vector<1x8x256xf32>,
    return
  }
  func.func @transform_0(%arg0: i32, %arg1: i32) -> (i32, i32, i32) {
    %c0_i32 = arith.constant 0 : i32
    %c0_i32_0 = arith.constant 0 : i32
    return %arg0, %c0_i32, %arg1 : i32, i32, i32
  }
  func.func @transform_1(%arg0: i32, %arg1: i32) -> (i32, i32, i32) {
    %c0_i32 = arith.constant 0 : i32
    %c0_i32_0 = arith.constant 0 : i32
    return %arg0, %c0_i32, %arg1 : i32, i32, i32
  }
  func.func @transform_2(%arg0: i32, %arg1: i32) -> (i32, i32) {
    %c0_i32 = arith.constant 0 : i32
    %c0_i32_0 = arith.constant 0 : i32
    %c0_i32_1 = arith.constant 0 : i32
    return %c0_i32, %c0_i32_0 : i32, i32
  }
  func.func @transform_3(%arg0: i32, %arg1: i32) -> (i32, i32) {
    %c0_i32 = arith.constant 0 : i32
    %c0_i32_0 = arith.constant 0 : i32
    %c0_i32_1 = arith.constant 0 : i32
    return %c0_i32, %c0_i32_0 : i32, i32
  }
  func.func @transform_4(%arg0: i32, %arg1: i32) -> (i32, i32) {
    %c0_i32 = arith.constant 0 : i32
    %c0_i32_0 = arith.constant 0 : i32
    %c0_i32_1 = arith.constant 0 : i32
    return %c0_i32, %c0_i32_0 : i32, i32
  }
  func.func @transform_5(%arg0: i32, %arg1: i32) -> (i32, i32, i32) {
    %c0_i32 = arith.constant 0 : i32
    %c0_i32_0 = arith.constant 0 : i32
    return %arg0, %c0_i32, %arg1 : i32, i32, i32
  }
}

</mosaic_0001>

<llo_original>
// kernel: conconv_forward.1
$region0: #{conconv_forward.1}
  #allocation0 [shape = 'u32[]', space=smem, size = 0x4, offset = 0x4, fixed_abs, tag = 'smem constant byte address 0x4 - core index']
  #allocation1 [shape = 'u32[144,128]{1,0:T(1,128)}', space=vmem, size = 0x12000, scoped, tag = 'internal scratch']
  %s0 = inlined_call_operand.vmem [shape: f32[2,4,256], index: 0, kind: input, shape index: {}]
  %s1 = inlined_call_operand.vmem [shape: f32[2,4,256], index: 1, kind: input, shape index: {}]
  %s2 = inlined_call_operand.vmem [shape: f32[8,4], index: 2, kind: input, shape index: {}]
  %s3 = inlined_call_operand.vmem [shape: f32[8,4], index: 3, kind: input, shape index: {}]
  %s4 = inlined_call_operand.vmem [shape: f32[8,1], index: 4, kind: input, shape index: {}]
  %s5 = inlined_call_operand.vmem [shape: f32[2,8,256], index: 5, kind: output, shape index: {}]
  %s6 = sld [smem:[#allocation0]]
  $region53: #{conconv_forward.1} parent=0
    _
  %s8 = ssub.s32 1, %s6
  %s9 = scalar_select 0, %s8, %s6
  loop: start=0, step=1, limit=4
  $region2: #{conconv_forward.1} parent=0 // loop_pre_header
    _
  $region3: #{conconv_forward.1} parent=0 // loop_header
    %s11 = sphi 0, %s15
    %p12 = scmp.ge.s32.totalorder %s11, 4
    %s18 = sphi 0, %s30
    %s19 = sphi 0, %s26
    %s20 = sphi 0, %s18
    %s21 = sphi 0, %s19
    %s22 = sphi 0, %s20
    %s23 = sphi 0, %s21
    %s35 = sphi 0, %s37
    %s38 = sphi 0, %s35
    %s39 = sphi 0, %s38
    %s55 = sphi 0, %s39
    %s63 = sphi 0, %s65
    %s66 = sphi 0, %s63
    %s67 = sphi 0, %s66
    %s83 = sphi 0, %s67
    %s87 = sphi 0, %s87
    %s89 = sphi 0, %s87
    %s90 = sphi 0, %s89
    %s104 = sphi 0, %s90
    %s108 = sphi 0, %s108
    %s110 = sphi 0, %s108
    %s111 = sphi 0, %s110
    %s125 = sphi 0, %s111
    %s129 = sphi 0, %s129
    %s131 = sphi 0, %s129
    %s132 = sphi 0, %s131
    %s146 = sphi 0, %s132
    %s154 = sphi 0, %s156
    %s157 = sphi 0, %s154
    %s158 = sphi 0, %s157
    %s174 = sphi 0, %s158
  $region4: #{conconv_forward.1} parent=0 // loop_header_branch
    %14 = sbr.rel (%p12) target = $region8
  $region5: #{conconv_forward.1} parent=0 // loop_body
    %s16 = ssub.s32 %s11, 1
    %s17 = ssub.s32 %s11, 2
    %s24 = sadd.s32 1, %s19
    %p25 = scmp.ge.s32.totalorder %s24, 1
    %s26 = scalar_select %p25, 0, %s24
    %s27 = sadd.s32 1, %s18
    %s28 = scalar_select %p25, %s27, %s18
    %p29 = scmp.ge.s32.totalorder %s28, 2
    %s30 = scalar_select %p29, 0, %s28
    %s31 = ssub.s32 %s18, %s30
    %s32 = ssub.s32 %s19, %s26
    %s33 = sor.u32 %s31, %s32
    %p34 = scmp.eq.s32.totalorder %s33, 0
    %s36 = sadd.s32 %s35, 1
    %s37 = scalar_select %p34, %s35, %s36
    %p40 = pneg %p34
    %p41 = scmp.eq.s32.totalorder %s11, 1
    %p42 = por %p40, %p41
    %p43 = scmp.ne.s32.totalorder %s35, %s38
    %p44 = scmp.eq.s32.totalorder %s11, 0
    %p45 = por %p43, %p44
    %p46 = scmp.ne.s32.totalorder %s35, %s38
    %p47 = scmp.eq.s32.totalorder %s16, 1
    %p48 = por %p46, %p47
    %p49 = scmp.ne.s32.totalorder %s38, %s39
    %p50 = scmp.eq.s32.totalorder %s16, 0
    %p51 = por %p49, %p50
    %p52 = scmp.ne.s32.totalorder %s38, %s39
    %p53 = scmp.eq.s32.totalorder %s17, 1
    %p54 = por %p52, %p53
    %p56 = scmp.ne.s32.totalorder %s39, %s55
    %p57 = scmp.eq.s32.totalorder %s17, 0
    %p58 = por %p56, %p57
    %s59 = ssub.s32 %s18, %s30
    %s60 = ssub.s32 %s19, %s26
    %s61 = sor.u32 %s59, %s60
    %p62 = scmp.eq.s32.totalorder %s61, 0
    %s64 = sadd.s32 %s63, 1
    %s65 = scalar_select %p62, %s63, %s64
    %p68 = pneg %p62
    %p69 = scmp.eq.s32.totalorder %s11, 1
    %p70 = por %p68, %p69
    %p71 = scmp.ne.s32.totalorder %s63, %s66
    %p72 = scmp.eq.s32.totalorder %s11, 0
    %p73 = por %p71, %p72
    %p74 = scmp.ne.s32.totalorder %s63, %s66
    %p75 = scmp.eq.s32.totalorder %s16, 1
    %p76 = por %p74, %p75
    %p77 = scmp.ne.s32.totalorder %s66, %s67
    %p78 = scmp.eq.s32.totalorder %s16, 0
    %p79 = por %p77, %p78
    %p80 = scmp.ne.s32.totalorder %s66, %s67
    %p81 = scmp.eq.s32.totalorder %s17, 1
    %p82 = por %p80, %p81
    %p84 = scmp.ne.s32.totalorder %s67, %s83
    %p85 = scmp.eq.s32.totalorder %s17, 0
    %p86 = por %p84, %p85
    %s88 = sadd.s32 %s87, 1
    %p91 = scmp.eq.s32.totalorder %s11, 1
    %p92 = scmp.ne.s32.totalorder %s87, %s89
    %p93 = scmp.eq.s32.totalorder %s11, 0
    %p94 = por %p92, %p93
    %p95 = scmp.ne.s32.totalorder %s87, %s89
    %p96 = scmp.eq.s32.totalorder %s16, 1
    %p97 = por %p95, %p96
    %p98 = scmp.ne.s32.totalorder %s89, %s90
    %p99 = scmp.eq.s32.totalorder %s16, 0
    %p100 = por %p98, %p99
    %p101 = scmp.ne.s32.totalorder %s89, %s90
    %p102 = scmp.eq.s32.totalorder %s17, 1
    %p103 = por %p101, %p102
    %p105 = scmp.ne.s32.totalorder %s90, %s104
    %p106 = scmp.eq.s32.totalorder %s17, 0
    %p107 = por %p105, %p106
    %s109 = sadd.s32 %s108, 1
    %p112 = scmp.eq.s32.totalorder %s11, 1
    %p113 = scmp.ne.s32.totalorder %s108, %s110
    %p114 = scmp.eq.s32.totalorder %s11, 0
    %p115 = por %p113, %p114
    %p116 = scmp.ne.s32.totalorder %s108, %s110
    %p117 = scmp.eq.s32.totalorder %s16, 1
    %p118 = por %p116, %p117
    %p119 = scmp.ne.s32.totalorder %s110, %s111
    %p120 = scmp.eq.s32.totalorder %s16, 0
    %p121 = por %p119, %p120
    %p122 = scmp.ne.s32.totalorder %s110, %s111
    %p123 = scmp.eq.s32.totalorder %s17, 1
    %p124 = por %p122, %p123
    %p126 = scmp.ne.s32.totalorder %s111, %s125
    %p127 = scmp.eq.s32.totalorder %s17, 0
    %p128 = por %p126, %p127
    %s130 = sadd.s32 %s129, 1
    %p133 = scmp.eq.s32.totalorder %s11, 1
    %p134 = scmp.ne.s32.totalorder %s129, %s131
    %p135 = scmp.eq.s32.totalorder %s11, 0
    %p136 = por %p134, %p135
    %p137 = scmp.ne.s32.totalorder %s129, %s131
    %p138 = scmp.eq.s32.totalorder %s16, 1
    %p139 = por %p137, %p138
    %p140 = scmp.ne.s32.totalorder %s131, %s132
    %p141 = scmp.eq.s32.totalorder %s16, 0
    %p142 = por %p140, %p141
    %p143 = scmp.ne.s32.totalorder %s131, %s132
    %p144 = scmp.eq.s32.totalorder %s17, 1
    %p145 = por %p143, %p144
    %p147 = scmp.ne.s32.totalorder %s132, %s146
    %p148 = scmp.eq.s32.totalorder %s17, 0
    %p149 = por %p147, %p148
    %s150 = ssub.s32 %s18, %s30
    %s151 = ssub.s32 %s19, %s26
    %s152 = sor.u32 %s150, %s151
    %p153 = scmp.eq.s32.totalorder %s152, 0
    %s155 = sadd.s32 %s154, 1
    %s156 = scalar_select %p153, %s154, %s155
    %p159 = pneg %p153
    %p160 = scmp.eq.s32.totalorder %s11, 1
    %p161 = por %p159, %p160
    %p162 = scmp.ne.s32.totalorder %s154, %s157
    %p163 = scmp.eq.s32.totalorder %s11, 0
    %p164 = por %p162, %p163
    %p165 = scmp.ne.s32.totalorder %s154, %s157
    %p166 = scmp.eq.s32.totalorder %s16, 1
    %p167 = por %p165, %p166
    %p168 = scmp.ne.s32.totalorder %s157, %s158
    %p169 = scmp.eq.s32.totalorder %s16, 0
    %p170 = por %p168, %p169
    %p171 = scmp.ne.s32.totalorder %s157, %s158
    %p172 = scmp.eq.s32.totalorder %s17, 1
    %p173 = por %p171, %p172
    %p175 = scmp.ne.s32.totalorder %s158, %s174
    %p176 = scmp.eq.s32.totalorder %s17, 0
    %p177 = por %p175, %p176
    %p178 = scmp.le.s32.totalorder 1, %s11
    %p179 = scmp.lt.s32.totalorder %s11, 3
    %p180 = pnand %p178, %p179
    %p181 = pneg %p180
    // Predicated region
    $region9: #{conconv_forward.1} parent=5 // pred_check
      _
    $region10: #{conconv_forward.1} parent=5 // pred_check_branch
      %183 = sbr.rel (%p180) target = $region12
    $region11: #{conconv_forward.1} parent=5 // pred_region
      %s184 = ssub.s32 %s11, 1
      // Predicated region
      $region13: #{conconv_forward.1} parent=11 // pred_check
        %p185 = pneg %p100
      $region14: #{conconv_forward.1} parent=11 // pred_check_branch
        %187 = sbr.rel (%p185) target = $region16
      $region15: #{conconv_forward.1} parent=11 // pred_region
        _
      $region16: #{conconv_forward.1} parent=11 // pred_fallthru
        _
      // Predicated region
      $region17: #{conconv_forward.1} parent=11 // pred_check
        %p188 = pneg %p121
      $region18: #{conconv_forward.1} parent=11 // pred_check_branch
        %190 = sbr.rel (%p188) target = $region20
      $region19: #{conconv_forward.1} parent=11 // pred_region
        _
      $region20: #{conconv_forward.1} parent=11 // pred_fallthru
        _
      // Predicated region
      $region21: #{conconv_forward.1} parent=11 // pred_check
        %p191 = pneg %p142
      $region22: #{conconv_forward.1} parent=11 // pred_check_branch
        %193 = sbr.rel (%p191) target = $region24
      $region23: #{conconv_forward.1} parent=11 // pred_region
        _
      $region24: #{conconv_forward.1} parent=11 // pred_fallthru
        _
    $region12: #{conconv_forward.1} parent=5 // pred_fallthru
      _
    %p194 = scmp.lt.s32.totalorder %s11, 2
    // Predicated region
    $region25: #{conconv_forward.1} parent=5 // pred_check
      %p195 = pneg %p194
    $region26: #{conconv_forward.1} parent=5 // pred_check_branch
      %197 = sbr.rel (%p195) target = $region28
    $region27: #{conconv_forward.1} parent=5 // pred_region
      // Predicated region
      $region29: #{conconv_forward.1} parent=27 // pred_check
        %p198 = pneg %p45
      $region30: #{conconv_forward.1} parent=27 // pred_check_branch
        %200 = sbr.rel (%p198) target = $region32
      $region31: #{conconv_forward.1} parent=27 // pred_region
        %s201 = smul.u32 2, %s19
        %p202 = scmp.lt.s32.totalorder %s18, 1
        %s203 = scalar_select %p202, %s18, 1
        %p204 = scmp.lt.s32.totalorder %s201, 1
        %s205 = scalar_select %p204, %s201, 1
        %s206 = smul.addr %s203, 2
        %s207 = sadd.s32 %s205, %s206
        %s208 = smul.addr %s207, 4
        %s209 = scalar_lea.vmem %s0, %s208
        %s210 = smul.u32 2, %s19
      $region32: #{conconv_forward.1} parent=27 // pred_fallthru
        _
      // Predicated region
      $region33: #{conconv_forward.1} parent=27 // pred_check
        %p211 = pneg %p73
      $region34: #{conconv_forward.1} parent=27 // pred_check_branch
        %213 = sbr.rel (%p211) target = $region36
      $region35: #{conconv_forward.1} parent=27 // pred_region
        %s214 = smul.u32 2, %s19
        %p215 = scmp.lt.s32.totalorder %s18, 1
        %s216 = scalar_select %p215, %s18, 1
        %p217 = scmp.lt.s32.totalorder %s214, 1
        %s218 = scalar_select %p217, %s214, 1
        %s219 = smul.addr %s216, 2
        %s220 = sadd.s32 %s218, %s219
        %s221 = smul.addr %s220, 4
        %s222 = scalar_lea.vmem %s1, %s221
        %s223 = smul.u32 2, %s19
      $region36: #{conconv_forward.1} parent=27 // pred_fallthru
        _
    $region28: #{conconv_forward.1} parent=5 // pred_fallthru
      _
    %p224 = scmp.le.s32.totalorder 1, %s11
    %p225 = scmp.lt.s32.totalorder %s11, 3
    %p226 = pnand %p224, %p225
    %p227 = pneg %p226
    // Predicated region
    $region37: #{conconv_forward.1} parent=5 // pred_check
      _
    $region38: #{conconv_forward.1} parent=5 // pred_check_branch
      %229 = sbr.rel (%p226) target = $region40
    $region39: #{conconv_forward.1} parent=5 // pred_region
      %s230 = ssub.s32 %s11, 1
      %s231 = smul.u32 2, %s21
      %p232 = scmp.lt.s32.totalorder %s20, 1
      %s233 = scalar_select %p232, %s20, 1
      %p234 = scmp.lt.s32.totalorder %s231, 1
      %s235 = scalar_select %p234, %s231, 1
      %s236 = smul.addr %s233, 2
      %s237 = sadd.s32 %s235, %s236
      %s238 = smul.addr %s237, 4
      %s239 = scalar_lea.vmem %s0, %s238
      %p240 = pneg %p51
      %p241 = pneg %p48
      %s242 = smul.u32 2, %s21
      %p243 = scmp.lt.s32.totalorder %s20, 1
      %s244 = scalar_select %p243, %s20, 1
      %p245 = scmp.lt.s32.totalorder %s242, 1
      %s246 = scalar_select %p245, %s242, 1
      %s247 = smul.addr %s244, 2
      %s248 = sadd.s32 %s246, %s247
      %s249 = smul.addr %s248, 4
      %s250 = scalar_lea.vmem %s1, %s249
      %p251 = pneg %p79
      %p252 = pneg %p76
      %p253 = pneg %p100
      %p254 = pneg %p97
      %p255 = pneg %p121
      %p256 = pneg %p118
      %p257 = pneg %p142
      %p258 = pneg %p139
      %p259 = pneg %p170
      %p260 = pneg %p167
      %s261 = smul.u32 2, %s21
      %p262 = scmp.lt.s32.totalorder %s20, 1
      %s263 = scalar_select %p262, %s20, 1
      %p264 = scmp.lt.s32.totalorder %s261, 1
      %s265 = scalar_select %p264, %s261, 1
      %s266 = smul.addr %s263, 2
      %s267 = sadd.s32 %s265, %s266
      %s268 = smul.addr %s267, 8
      %s269 = scalar_lea.vmem %s5, %s268
      %s270 = smul.u32 2, %s21
      %p271 = scmp.lt.s32.totalorder %s20, 1
      %s272 = scalar_select %p271, %s20, 1
      %p273 = scmp.lt.s32.totalorder %s270, 1
      %s274 = scalar_select %p273, %s270, 1
      %s275 = smul.addr %s272, 2
      %s276 = sadd.s32 %s274, %s275
      %s277 = smul.addr %s276, 4
      %s278 = scalar_lea.vmem %s0, %s277
      %s279 = smul.u32 2, %s21
      %s280 = smul.u32 2, %s21
      %p281 = scmp.lt.s32.totalorder %s20, 1
      %s282 = scalar_select %p281, %s20, 1
      %p283 = scmp.lt.s32.totalorder %s280, 1
      %s284 = scalar_select %p283, %s280, 1
      %s285 = smul.addr %s282, 2
      %s286 = sadd.s32 %s284, %s285
      %s287 = smul.addr %s286, 4
      %s288 = scalar_lea.vmem %s1, %s287
      %s289 = smul.u32 2, %s21
      %s290 = smul.u32 2, %s21
      %p291 = scmp.lt.s32.totalorder %s20, 1
      %s292 = scalar_select %p291, %s20, 1
      %p293 = scmp.lt.s32.totalorder %s290, 1
      %s294 = scalar_select %p293, %s290, 1
      %s295 = smul.addr %s292, 2
      %s296 = sadd.s32 %s294, %s295
      %s297 = smul.addr %s296, 8
      %s298 = scalar_lea.vmem %s5, %s297
      %s299 = smul.u32 2, %s21
      %v300 = vld [vmem:[%s2] sm:$0xff]
      %v301 = vld [vmem:[%s3] sm:$0xff]
      %v302 = vld [vmem:[%s4] sm:$0xff]
      %v303 = vld [vmem:[%s278] sm:$0xff]
      %v304 = vld [vmem:[%s288] sm:$0xff]
      %v306 = vcombine.high %v304, %v304
      %vm307 = vcmask 31744
      %v309 = vsel %vm307, %v301, 0
      %vm311 = vcmask 1043456
      %v312 = vsel %vm311, %v304, 0
      %v314 = vsel %vm311, %v306, 0
      %316 = vmatprep.subr.mxu0 0.0
      %317 = vmatpush1.msra.mxu0 0.0
      %318 = vmatprep.subr.mxu0 0.0
      %319 = vmatpush1.msra.mxu0 0.0
      %320 = vmatprep.subr.mxu0 0.0
      %321 = vmatpush1.msra.mxu0 0.0
      %322 = vmatprep.subr.mxu0 0.0
      %323 = vmatpush1.msra.mxu0 0.0
      %324 = vmatprep.subr.mxu0 0.0
      %325 = vmatpush1.msra.mxu0 0.0
      %326 = vmatprep.subr.mxu0 0.0
      %327 = vmatpush1.msra.mxu0 0.0
      %328 = vmatprep.subr.mxu0 0.0
      %329 = vmatpush1.msra.mxu0 0.0
      %330 = vmatprep.subr.mxu0 0.0
      %331 = vmatpush1.msra.mxu0 0.0
      %332 = vmatprep.subr.mxu0 0.0
      %333 = vmatpush1.msra.mxu0 0.0
      %334 = vmatprep.subr.mxu0 0.0
      %335 = vmatpush1.msra.mxu0 0.0
      %336 = vmatprep.subr.mxu0 0.0
      %337 = vmatpush1.msra.mxu0 0.0
      %338 = vmatprep.subr.mxu0 0.0
      %339 = vmatpush1.msra.mxu0 0.0
      %340 = vmatprep.subr.mxu0 0.0
      %341 = vmatpush1.msra.mxu0 0.0
      %342 = vmatprep.subr.mxu0 0.0
      %343 = vmatpush1.msra.mxu0 0.0
      %344 = vmatprep.subr.mxu0 0.0
      %345 = vmatpush1.msra.mxu0 0.0
      %346 = vmatprep.subr.mxu0 %v314
      %347 = vmatpush1.msra.mxu0 %v312
      %348 = vmatprep.subr.mxu0 0.0
      %349 = vmatpush2.msra.mxu0 0.0
      %350 = vmatprep.subr.mxu0 0.0
      %351 = vmatpush2.msra.mxu0 0.0
      %352 = vmatprep.subr.mxu0 0.0
      %353 = vmatpush2.msra.mxu0 0.0
      %354 = vmatprep.subr.mxu0 0.0
      %355 = vmatpush2.msra.mxu0 0.0
      %356 = vmatprep.subr.mxu0 0.0
      %357 = vmatpush2.msra.mxu0 0.0
      %358 = vmatprep.subr.mxu0 0.0
      %359 = vmatpush2.msra.mxu0 0.0
      %360 = vmatprep.subr.mxu0 0.0
      %361 = vmatpush2.msra.mxu0 0.0
      %362 = vmatprep.subr.mxu0 0.0
      %363 = vmatpush2.msra.mxu0 0.0
      %364 = vmatprep.subr.mxu0 0.0
      %365 = vmatpush2.msra.mxu0 0.0
      %366 = vmatprep.subr.mxu0 0.0
      %367 = vmatpush2.msra.mxu0 0.0
      %368 = vmatprep.subr.mxu0 0.0
      %369 = vmatpush2.msra.mxu0 0.0
      %370 = vmatprep.subr.mxu0 0.0
      %371 = vmatpush2.msra.mxu0 0.0
      %372 = vmatprep.subr.mxu0 0.0
      %373 = vmatpush2.msra.mxu0 0.0
      %374 = vmatprep.subr.mxu0 0.0
      %375 = vmatpush2.msra.mxu0 0.0
      %376 = vmatprep.subr.mxu0 0.0
      %377 = vmatpush2.msra.mxu0 0.0
      %378 = vmatprep.subr.mxu0 0.0
      %379 = vmatpush2.msra.mxu0 0.0
      %380 = vmatprep.mubr.f32.mxu0 0.0
      %381 = vmatmul.mubr.f32.gmra.mxu0 %v309
      %v382 = vpop.f32.mrf.mxu0
      %v383 = vadd.f32 0.0, %v382
      %v384 = vpop.f32.mrf.mxu0
      %v385 = vadd.f32 0.0, %v384
      %386 = vdwg.mxu0
      %v388 = vcombine.high %v303, %v303
      %v390 = vsel %vm307, %v300, 0
      %v392 = vsel %vm311, %v303, 0
      %v394 = vsel %vm311, %v388, 0
      %396 = vmatprep.subr.mxu0 0.0
      %397 = vmatpush1.msra.mxu0 0.0
      %398 = vmatprep.subr.mxu0 0.0
      %399 = vmatpush1.msra.mxu0 0.0
      %400 = vmatprep.subr.mxu0 0.0
      %401 = vmatpush1.msra.mxu0 0.0
      %402 = vmatprep.subr.mxu0 0.0
      %403 = vmatpush1.msra.mxu0 0.0
      %404 = vmatprep.subr.mxu0 0.0
      %405 = vmatpush1.msra.mxu0 0.0
      %406 = vmatprep.subr.mxu0 0.0
      %407 = vmatpush1.msra.mxu0 0.0
      %408 = vmatprep.subr.mxu0 0.0
      %409 = vmatpush1.msra.mxu0 0.0
      %410 = vmatprep.subr.mxu0 0.0
      %411 = vmatpush1.msra.mxu0 0.0
      %412 = vmatprep.subr.mxu0 0.0
      %413 = vmatpush1.msra.mxu0 0.0
      %414 = vmatprep.subr.mxu0 0.0
      %415 = vmatpush1.msra.mxu0 0.0
      %416 = vmatprep.subr.mxu0 0.0
      %417 = vmatpush1.msra.mxu0 0.0
      %418 = vmatprep.subr.mxu0 0.0
      %419 = vmatpush1.msra.mxu0 0.0
      %420 = vmatprep.subr.mxu0 0.0
      %421 = vmatpush1.msra.mxu0 0.0
      %422 = vmatprep.subr.mxu0 0.0
      %423 = vmatpush1.msra.mxu0 0.0
      %424 = vmatprep.subr.mxu0 0.0
      %425 = vmatpush1.msra.mxu0 0.0
      %426 = vmatprep.subr.mxu0 %v394
      %427 = vmatpush1.msra.mxu0 %v392
      %428 = vmatprep.subr.mxu0 0.0
      %429 = vmatpush2.msra.mxu0 0.0
      %430 = vmatprep.subr.mxu0 0.0
      %431 = vmatpush2.msra.mxu0 0.0
      %432 = vmatprep.subr.mxu0 0.0
      %433 = vmatpush2.msra.mxu0 0.0
      %434 = vmatprep.subr.mxu0 0.0
      %435 = vmatpush2.msra.mxu0 0.0
      %436 = vmatprep.subr.mxu0 0.0
      %437 = vmatpush2.msra.mxu0 0.0
      %438 = vmatprep.subr.mxu0 0.0
      %439 = vmatpush2.msra.mxu0 0.0
      %440 = vmatprep.subr.mxu0 0.0
      %441 = vmatpush2.msra.mxu0 0.0
      %442 = vmatprep.subr.mxu0 0.0
      %443 = vmatpush2.msra.mxu0 0.0
      %444 = vmatprep.subr.mxu0 0.0
      %445 = vmatpush2.msra.mxu0 0.0
      %446 = vmatprep.subr.mxu0 0.0
      %447 = vmatpush2.msra.mxu0 0.0
      %448 = vmatprep.subr.mxu0 0.0
      %449 = vmatpush2.msra.mxu0 0.0
      %450 = vmatprep.subr.mxu0 0.0
      %451 = vmatpush2.msra.mxu0 0.0
      %452 = vmatprep.subr.mxu0 0.0
      %453 = vmatpush2.msra.mxu0 0.0
      %454 = vmatprep.subr.mxu0 0.0
      %455 = vmatpush2.msra.mxu0 0.0
      %456 = vmatprep.subr.mxu0 0.0
      %457 = vmatpush2.msra.mxu0 0.0
      %458 = vmatprep.subr.mxu0 0.0
      %459 = vmatpush2.msra.mxu0 0.0
      %460 = vmatprep.mubr.f32.mxu0 0.0
      %461 = vmatmul.mubr.f32.gmra.mxu0 %v390
      %v462 = vpop.f32.mrf.mxu0
      %v463 = vadd.f32 %v383, %v462
      %v464 = vpop.f32.mrf.mxu0
      %v465 = vadd.f32 %v385, %v464
      %466 = vdwg.mxu0
      %468 = vset.pattern.permute.xlu0 0
      %469 = vperm.xlu0 %468, %v302
      %v470 = vpop.permute.xlu0 %469
      %v472 = vadd.f32 %v463, %v470
      %v473 = vadd.f32 %v465, %v470
      %474 = vst [vmem:[%s298] sm:$0xff] %v472
      %475 = vst [vmem:[%s298 + $0x8] sm:$0xff] %v473
      %s476 = smul.u32 2, %s21
      %p477 = scmp.lt.s32.totalorder %s20, 1
      %s478 = scalar_select %p477, %s20, 1
      %p479 = scmp.lt.s32.totalorder %s476, 1
      %s480 = scalar_select %p479, %s476, 1
      %s481 = smul.addr %s478, 2
      %s482 = sadd.s32 %s480, %s481
      %s483 = smul.addr %s482, 8
      %s484 = scalar_lea.vmem %s5, %s483
      // Predicated region
      $region41: #{conconv_forward.1} parent=39 // pred_check
        %p485 = pneg %p167
      $region42: #{conconv_forward.1} parent=39 // pred_check_branch
        %487 = sbr.rel (%p485) target = $region44
      $region43: #{conconv_forward.1} parent=39 // pred_region
        %s488 = smul.u32 2, %s21
      $region44: #{conconv_forward.1} parent=39 // pred_fallthru
        _
    $region40: #{conconv_forward.1} parent=5 // pred_fallthru
      _
    %p489 = scmp.le.s32.totalorder 2, %s11
    // Predicated region
    $region45: #{conconv_forward.1} parent=5 // pred_check
      %p490 = pneg %p489
    $region46: #{conconv_forward.1} parent=5 // pred_check_branch
      %492 = sbr.rel (%p490) target = $region48
    $region47: #{conconv_forward.1} parent=5 // pred_region
      %s493 = ssub.s32 %s11, 2
      // Predicated region
      $region49: #{conconv_forward.1} parent=47 // pred_check
        %p494 = pneg %p173
      $region50: #{conconv_forward.1} parent=47 // pred_check_branch
        %496 = sbr.rel (%p494) target = $region52
      $region51: #{conconv_forward.1} parent=47 // pred_region
        %s497 = smul.u32 2, %s23
        %p498 = scmp.lt.s32.totalorder %s22, 1
        %s499 = scalar_select %p498, %s22, 1
        %p500 = scmp.lt.s32.totalorder %s497, 1
        %s501 = scalar_select %p500, %s497, 1
        %s502 = smul.addr %s499, 2
        %s503 = sadd.s32 %s501, %s502
        %s504 = smul.addr %s503, 8
        %s505 = scalar_lea.vmem %s5, %s504
      $region52: #{conconv_forward.1} parent=47 // pred_fallthru
        _
    $region48: #{conconv_forward.1} parent=5 // pred_fallthru
      _
  $region6: #{conconv_forward.1} parent=0 // loop_footer
    %s15 = sadd.s32 1, %s11
  $region7: #{conconv_forward.1} parent=0 // loop_footer_branch
    %10 = sbr.rel target = $region3
  $region8: #{conconv_forward.1} parent=0 // loop_exit
    _

</llo_original>
